<compile_context>
chip_gen: v7x
topology: tpu7x:2x2x1
jax: 0.10.0
libtpu: 0.0.40
codegen_flags: <defaults>
</compile_context>

<pallas_src>
import functools

import jax
import jax.numpy as jnp
from jax import lax
from jax.experimental import pallas as pl
from jax.experimental.pallas import tpu as pltpu

_EPS = 1e-12  # torch F.normalize default


def _ipow(x, p):
    """x**p for a static integer p >= 1, unrolled at trace time (VPU muls)."""
    acc = None
    base = x
    while p > 0:
        if p & 1:
            acc = base if acc is None else acc * base
        p >>= 1
        if p:
            base = base * base
    return acc


def _rkd_tile_kernel(z1_ref, z2_ref, zan_ref, out_ref, *,
                     inv_t1, inv_t2, n_valid, mm_dtype, pow1, pow2):
    """Un-normalized (KL1 + KL2) contribution of one row tile -> out_ref[0,0]."""
    f32 = jnp.float32
    tile_n = z1_ref.shape[0]

    # L2-normalize this row tile only (zan arrives pre-normalized, mm_dtype).
    def l2_normalize(ref):
        x = ref[...].astype(f32)
        ss = jnp.sum(x * x, axis=1, keepdims=True)
        return x * lax.rsqrt(jnp.maximum(ss, f32(_EPS * _EPS)))  # 1 EUP op/row

    z1n = l2_normalize(z1_ref).astype(mm_dtype)
    z2n = l2_normalize(z2_ref).astype(mm_dtype)
    zan = zan_ref[...]

    # Two MXU matmuls sharing the same stationary RHS; contract feature dims
    # directly (no explicit transpose, no concat/slice materialization).
    dims = (((1,), (1,)), ((), ()))
    sim_1 = lax.dot_general(z1n, zan, dims, preferred_element_type=f32)
    sim_2 = lax.dot_general(z2n, zan, dims, preferred_element_type=f32)

    # softmax(sim_i).  Row maxes are shared with the temperature-scaled terms
    # because max(sim / t) = max(sim) / t for t > 0.
    c1 = sim_1 - jnp.max(sim_1, axis=1, keepdims=True)
    c2 = sim_2 - jnp.max(sim_2, axis=1, keepdims=True)
    e1 = jnp.exp(c1)
    e2 = jnp.exp(c2)
    p1 = e1 * (f32(1.0) / jnp.sum(e1, axis=1, keepdims=True))
    p2 = e2 * (f32(1.0) / jnp.sum(e2, axis=1, keepdims=True))
    targets = (p1 + p2) * f32(0.5)

    # softmax(targets); log(tgt) is folded below as ct - log(st).
    ct = targets - jnp.max(targets, axis=1, keepdims=True)
    et = jnp.exp(ct)
    st = jnp.sum(et, axis=1, keepdims=True)
    tgt = et * (f32(1.0) / st)

    # Temperature-scaled log-sum-exp terms.  With pow_i set (1/t_i integral),
    # exp(c/t) = exp(c)**(1/t) runs on the VPU instead of the single EUP.
    x1 = c1 * f32(inv_t1)
    x2 = c2 * f32(inv_t2)
    s1 = jnp.sum(_ipow(e1, pow1) if pow1 is not None else jnp.exp(x1),
                 axis=1, keepdims=True)
    s2 = jnp.sum(_ipow(e2, pow2) if pow2 is not None else jnp.exp(x2),
                 axis=1, keepdims=True)

    # Folded KL: per row,
    #   KL1+KL2 = sum_j tgt*(2*ct - x1 - x2) - 2*log(st) + log(s1) + log(s2)
    w = f32(2.0) * ct - x1 - x2
    row = (jnp.sum(tgt * w, axis=1, keepdims=True)
           - f32(2.0) * jnp.log(st) + jnp.log(s1) + jnp.log(s2))

    # Mask zero-padded rows (N not a multiple of the tile size).
    row_ids = pl.program_id(0) * tile_n + lax.broadcasted_iota(
        jnp.int32, (tile_n, 1), 0)
    row = jnp.where(row_ids < n_valid, row, f32(0.0))

    out_ref[0, 0] = jnp.sum(row)


def _tpu_vmem_capacity_bytes():
    """Per-core VMEM capacity; conservative fallback if the query fails."""
    try:
        info = pltpu.get_tpu_info()
        cap = int(getattr(info, "vmem_capacity_bytes", 0))
        if cap > 0:
            return cap
    except Exception:
        pass
    return 64 * 2**20  # v7x per-TensorCore value (smallest current gen)


def _pick_row_tile(n, m, d, in_bytes, mm_bytes, budget_bytes, align):
    """Largest `align`-multiple row tile fitting the VMEM budget; prefer >=2
    tiles (when N allows) so v7x's second TensorCore gets work."""
    za_resident = 2 * m * d * mm_bytes            # constant block, double-buffered
    avail = max(budget_bytes - za_resident, align * 8 * m * 4)
    # Per-row live bytes: ~8 (row, M) f32 temporaries after the fold, plus
    # double-buffered z1/z2 input tiles, f32 normalized copies + mm-dtype casts.
    per_row = 8 * m * 4 + 2 * 2 * d * in_bytes + 2 * d * 4 + 2 * d * mm_bytes
    cap = max(align, (avail // per_row) // align * align)
    cap = min(cap, 1024)                          # diminishing returns past this
    n_full = -(-n // align) * align
    tile = min(cap, n_full)
    if n_full > align:                            # aim for at least two tiles
        half = -(-(n_full // 2) // align) * align
        tile = min(tile, max(align, half))
    return tile


def rkd_loss(z1, z2, za, t_1=0.1, t_2=0.01, *, mm_dtype=None, eup_offload=False):
    n, d = z1.shape
    m, d2 = za.shape
    assert z2.shape == (n, d) and d2 == d

    f32 = jnp.float32
    if mm_dtype is None:
        all_bf16 = all(a.dtype == jnp.bfloat16 for a in (z1, z2, za))
        mm_dtype = jnp.bfloat16 if all_bf16 else f32
    mm_dtype = jnp.dtype(mm_dtype)

    in_bytes = max(jnp.dtype(z1.dtype).itemsize, jnp.dtype(z2.dtype).itemsize)
    align = 16 if z1.dtype == jnp.bfloat16 else 8   # bf16 sublane packing

    vmem_cap = _tpu_vmem_capacity_bytes()
    vmem_limit = int(min((vmem_cap * 3) // 4, 100 * 2**20))
    tile_n = _pick_row_tile(n, m, d, in_bytes, mm_dtype.itemsize,
                            int(vmem_limit * 0.8), align)

    num_tiles = -(-n // tile_n)
    n_pad = num_tiles * tile_n
    if n_pad != n:
        pad = [(0, n_pad - n), (0, 0)]
        z1 = jnp.pad(z1, pad)
        z2 = jnp.pad(z2, pad)

    # Hoisted: normalize za ONCE and hand it to the kernel in the matmul dtype.
    za32 = za.astype(f32)
    zan = (za32 * lax.rsqrt(
        jnp.maximum(jnp.sum(za32 * za32, axis=1, keepdims=True),
                    f32(_EPS * _EPS)))).astype(mm_dtype)

    def _int_recip(t):
        r = 1.0 / float(t)
        ri = int(round(r))
        return ri if (ri >= 1 and abs(r - ri) < 1e-6) else None

    pow1 = _int_recip(t_1) if eup_offload else None
    pow2 = _int_recip(t_2) if eup_offload else None

    kernel = functools.partial(
        _rkd_tile_kernel,
        inv_t1=1.0 / float(t_1), inv_t2=1.0 / float(t_2),
        n_valid=n, mm_dtype=mm_dtype, pow1=pow1, pow2=pow2)

    partials = pl.pallas_call(
        kernel,
        out_shape=jax.ShapeDtypeStruct((num_tiles, 1), jnp.float32),
        grid=(num_tiles,),
        in_specs=[
            pl.BlockSpec((tile_n, d), lambda i: (i, 0)),
            pl.BlockSpec((tile_n, d), lambda i: (i, 0)),
            # zan: constant block index -> fetched once, stays VMEM-resident.
            pl.BlockSpec((m, d), lambda i: (0, 0)),
        ],
        # One f32 partial sum per row tile, in SMEM (no padded VMEM tile /
        # masked partial store for a lone scalar).
        out_specs=pl.BlockSpec((1, 1), lambda i: (i, 0), memory_space=pltpu.SMEM),
        compiler_params=pltpu.CompilerParams(
            # Independent row tiles: sharded across v7x's two TensorCores
            # (harmless on single-core v5e/v6e).
            dimension_semantics=("parallel",),
            vmem_limit_bytes=vmem_limit,
        ),
    )(z1, z2, zan)

    # F.kl_div(..., 'batchmean') divides by N; JS averages the two KLs.
    return jnp.sum(partials) / jnp.float32(2 * n)


def _reference(z1, z2, za, t_1=0.1, t_2=0.01):
    # Pure-JAX transcription of the PyTorch forward (sanity check).
    def l2n(x):
        return x / jnp.maximum(jnp.linalg.norm(x, axis=1, keepdims=True), 1e-12)

    z1, z2, za = l2n(z1), l2n(z2), l2n(za)
    n = z1.shape[0]
    sim_1 = z1 @ za.T
    sim_2 = z2 @ za.T
    targets = (jax.nn.softmax(sim_1, axis=1) + jax.nn.softmax(sim_2, axis=1)) / 2
    tgt = jax.nn.softmax(targets, axis=1)

    def kl(log_p, q):
        return jnp.sum(q * (jnp.log(q) - log_p)) / n

    kl1 = kl(jax.nn.log_softmax(sim_1 / t_1, axis=1), tgt)
    kl2 = kl(jax.nn.log_softmax(sim_2 / t_2, axis=1), tgt)
    return (kl1 + kl2) / 2.0


if __name__ == "__main__":
    key = jax.random.PRNGKey(0)
    k1, k2, k3 = jax.random.split(key, 3)
    N, D = 8, 32
    z1 = jax.random.normal(k1, (N, D), dtype=jnp.float32)
    z2 = jax.random.normal(k2, (N, D), dtype=jnp.float32)
    za = jax.random.normal(k3, (N, D), dtype=jnp.float32)

    ref = _reference(z1, z2, za)

    out = rkd_loss(z1, z2, za)
    jax.block_until_ready(out)
    assert jnp.allclose(out, ref, atol=1e-4, rtol=1e-4), (out, ref)

    # Opt-in EUP offload path (1/t integral) verified at the same tolerance.
    out_eup = rkd_loss(z1, z2, za, eup_offload=True)
    jax.block_until_ready(out_eup)
    assert jnp.allclose(out_eup, ref, atol=1e-4, rtol=1e-4), (out_eup, ref)

    print("KERNEL_OK")
</pallas_src>

<mosaic_0001>
module attributes {stable_mosaic.version = 11 : i64} {
  func.func @_rkd_tile_kernel(%arg0: i32, %arg1: memref<8x32xf32, #tpu.memory_space<vmem>>, %arg2: memref<8x32xf32, #tpu.memory_space<vmem>>, %arg3: memref<8x32xf32, #tpu.memory_space<vmem>>, %arg4: memref<1x1xf32, #tpu.memory_space<smem>>) attributes {dimension_semantics = [#tpu.dimension_semantics<parallel>], iteration_bounds = array<i64: 1>, scalar_prefetch = 0 : i64, scratch_operands = 0 : i64, tpu.core_type = #tpu.core_type<tc>, window_params = [{transform_indices = @transform_0, window_bounds = array<i64: 8, 32>}, {transform_indices = @transform_1, window_bounds = array<i64: 8, 32>}, {pipeline_mode = #tpu.pipeline_mode<synchronous>, transform_indices = @transform_2, window_bounds = array<i64: 8, 32>}, {transform_indices = @transform_3, window_bounds = array<i64: 1, 1>}]} {
    %c0 = arith.constant 0 : index
    %c0_0 = arith.constant 0 : index
    %0 = vector.load %arg1[%c0, %c0_0] : memref<8x32xf32, #tpu.memory_space<vmem>>, vector<8x32xf32>
    %1 = arith.mulf %0, %0 : vector<8x32xf32>
    %cst = arith.constant dense<0.000000e+00> : vector<8xf32>
    %2 = vector.multi_reduction <add>, %1, %cst [1] : vector<8x32xf32> to vector<8xf32>
    %3 = vector.shape_cast %2 : vector<8xf32> to vector<8x1xf32>
    %cst_1 = arith.constant 1.000000e-24 : f32
    %4 = vector.broadcast %cst_1 : f32 to vector<8x1xf32>
    %5 = arith.maximumf %3, %4 : vector<8x1xf32>
    %6 = math.rsqrt %5 : vector<8x1xf32>
    %7 = vector.broadcast %6 : vector<8x1xf32> to vector<8x32xf32>
    %8 = arith.mulf %0, %7 : vector<8x32xf32>
    %c0_2 = arith.constant 0 : index
    %c0_3 = arith.constant 0 : index
    %9 = vector.load %arg2[%c0_2, %c0_3] : memref<8x32xf32, #tpu.memory_space<vmem>>, vector<8x32xf32>
    %10 = arith.mulf %9, %9 : vector<8x32xf32>
    %cst_4 = arith.constant dense<0.000000e+00> : vector<8xf32>
    %11 = vector.multi_reduction <add>, %10, %cst_4 [1] : vector<8x32xf32> to vector<8xf32>
    %12 = vector.shape_cast %11 : vector<8xf32> to vector<8x1xf32>
    %cst_5 = arith.constant 1.000000e-24 : f32
    %13 = vector.broadcast %cst_5 : f32 to vector<8x1xf32>
    %14 = arith.maximumf %12, %13 : vector<8x1xf32>
    %15 = math.rsqrt %14 : vector<8x1xf32>
    %16 = vector.broadcast %15 : vector<8x1xf32> to vector<8x32xf32>
    %17 = arith.mulf %9, %16 : vector<8x32xf32>
    %c0_6 = arith.constant 0 : index
    %c0_7 = arith.constant 0 : index
    %18 = vector.load %arg3[%c0_6, %c0_7] : memref<8x32xf32, #tpu.memory_space<vmem>>, vector<8x32xf32>
    %cst_8 = arith.constant dense<0.000000e+00> : vector<8x8xf32>
    %19 = tpu.matmul %8, %18, %cst_8 {dimension_numbers = #tpu.dot_dimension_numbers<[1], [1], [0], [0], [0, 0, 1, 0], [], []>} : vector<8x32xf32>, vector<8x32xf32>, vector<8x8xf32> -> vector<8x8xf32>
    %cst_9 = arith.constant dense<0.000000e+00> : vector<8x8xf32>
    %20 = tpu.matmul %17, %18, %cst_9 {dimension_numbers = #tpu.dot_dimension_numbers<[1], [1], [0], [0], [0, 0, 1, 0], [], []>} : vector<8x32xf32>, vector<8x32xf32>, vector<8x8xf32> -> vector<8x8xf32>
    %cst_10 = arith.constant dense<0xFF800000> : vector<8xf32>
    %21 = vector.multi_reduction <maximumf>, %19, %cst_10 [1] : vector<8x8xf32> to vector<8xf32>
    %22 = vector.shape_cast %21 : vector<8xf32> to vector<8x1xf32>
    %23 = vector.broadcast %22 : vector<8x1xf32> to vector<8x8xf32>
    %24 = arith.subf %19, %23 : vector<8x8xf32>
    %cst_11 = arith.constant dense<0xFF800000> : vector<8xf32>
    %25 = vector.multi_reduction <maximumf>, %20, %cst_11 [1] : vector<8x8xf32> to vector<8xf32>
    %26 = vector.shape_cast %25 : vector<8xf32> to vector<8x1xf32>
    %27 = vector.broadcast %26 : vector<8x1xf32> to vector<8x8xf32>
    %28 = arith.subf %20, %27 : vector<8x8xf32>
    %29 = math.exp %24 : vector<8x8xf32>
    %30 = math.exp %28 : vector<8x8xf32>
    %cst_12 = arith.constant dense<0.000000e+00> : vector<8xf32>
    %31 = vector.multi_reduction <add>, %29, %cst_12 [1] : vector<8x8xf32> to vector<8xf32>
    %32 = vector.shape_cast %31 : vector<8xf32> to vector<8x1xf32>
    %cst_13 = arith.constant 1.000000e+00 : f32
    %33 = vector.broadcast %cst_13 : f32 to vector<8x1xf32>
    %34 = arith.divf %33, %32 : vector<8x1xf32>
    %35 = vector.broadcast %34 : vector<8x1xf32> to vector<8x8xf32>
    %36 = arith.mulf %29, %35 : vector<8x8xf32>
    %cst_14 = arith.constant dense<0.000000e+00> : vector<8xf32>
    %37 = vector.multi_reduction <add>, %30, %cst_14 [1] : vector<8x8xf32> to vector<8xf32>
    %38 = vector.shape_cast %37 : vector<8xf32> to vector<8x1xf32>
    %cst_15 = arith.constant 1.000000e+00 : f32
    %39 = vector.broadcast %cst_15 : f32 to vector<8x1xf32>
    %40 = arith.divf %39, %38 : vector<8x1xf32>
    %41 = vector.broadcast %40 : vector<8x1xf32> to vector<8x8xf32>
    %42 = arith.mulf %30, %41 : vector<8x8xf32>
    %43 = arith.addf %36, %42 : vector<8x8xf32>
    %cst_16 = arith.constant 5.000000e-01 : f32
    %44 = vector.broadcast %cst_16 : f32 to vector<8x8xf32>
    %45 = arith.mulf %43, %44 : vector<8x8xf32>
    %cst_17 = arith.constant dense<0xFF800000> : vector<8xf32>
    %46 = vector.multi_reduction <maximumf>, %45, %cst_17 [1] : vector<8x8xf32> to vector<8xf32>
    %47 = vector.shape_cast %46 : vector<8xf32> to vector<8x1xf32>
    %48 = vector.broadcast %47 : vector<8x1xf32> to vector<8x8xf32>
    %49 = arith.subf %45, %48 : vector<8x8xf32>
    %50 = math.exp %49 : vector<8x8xf32>
    %cst_18 = arith.constant dense<0.000000e+00> : vector<8xf32>
    %51 = vector.multi_reduction <add>, %50, %cst_18 [1] : vector<8x8xf32> to vector<8xf32>
    %52 = vector.shape_cast %51 : vector<8xf32> to vector<8x1xf32>
    %cst_19 = arith.constant 1.000000e+00 : f32
    %53 = vector.broadcast %cst_19 : f32 to vector<8x1xf32>
    %54 = arith.divf %53, %52 : vector<8x1xf32>
    %55 = vector.broadcast %54 : vector<8x1xf32> to vector<8x8xf32>
    %56 = arith.mulf %50, %55 : vector<8x8xf32>
    %cst_20 = arith.constant 1.000000e+01 : f32
    %57 = vector.broadcast %cst_20 : f32 to vector<8x8xf32>
    %58 = arith.mulf %24, %57 : vector<8x8xf32>
    %cst_21 = arith.constant 1.000000e+02 : f32
    %59 = vector.broadcast %cst_21 : f32 to vector<8x8xf32>
    %60 = arith.mulf %28, %59 : vector<8x8xf32>
    %61 = math.exp %58 : vector<8x8xf32>
    %cst_22 = arith.constant dense<0.000000e+00> : vector<8xf32>
    %62 = vector.multi_reduction <add>, %61, %cst_22 [1] : vector<8x8xf32> to vector<8xf32>
    %63 = vector.shape_cast %62 : vector<8xf32> to vector<8x1xf32>
    %64 = math.exp %60 : vector<8x8xf32>
    %cst_23 = arith.constant dense<0.000000e+00> : vector<8xf32>
    %65 = vector.multi_reduction <add>, %64, %cst_23 [1] : vector<8x8xf32> to vector<8xf32>
    %66 = vector.shape_cast %65 : vector<8xf32> to vector<8x1xf32>
    %cst_24 = arith.constant 2.000000e+00 : f32
    %67 = vector.broadcast %cst_24 : f32 to vector<8x8xf32>
    %68 = arith.mulf %67, %49 : vector<8x8xf32>
    %69 = arith.subf %68, %58 : vector<8x8xf32>
    %70 = arith.subf %69, %60 : vector<8x8xf32>
    %71 = arith.mulf %56, %70 : vector<8x8xf32>
    %cst_25 = arith.constant dense<0.000000e+00> : vector<8xf32>
    %72 = vector.multi_reduction <add>, %71, %cst_25 [1] : vector<8x8xf32> to vector<8xf32>
    %73 = vector.shape_cast %72 : vector<8xf32> to vector<8x1xf32>
    %74 = math.log %52 : vector<8x1xf32>
    %cst_26 = arith.constant 2.000000e+00 : f32
    %75 = vector.broadcast %cst_26 : f32 to vector<8x1xf32>
    %76 = arith.mulf %75, %74 : vector<8x1xf32>
    %77 = arith.subf %73, %76 : vector<8x1xf32>
    %78 = math.log %63 : vector<8x1xf32>
    %79 = arith.addf %77, %78 : vector<8x1xf32>
    %80 = math.log %66 : vector<8x1xf32>
    %81 = arith.addf %79, %80 : vector<8x1xf32>
    %c8_i32 = arith.constant 8 : i32
    %82 = arith.muli %arg0, %c8_i32 : i32
    %83 = tpu.iota {dimensions = array<i32: 0>} : vector<8x1xi32>
    %84 = vector.broadcast %82 : i32 to vector<8x1xi32>
    %85 = arith.addi %84, %83 : vector<8x1xi32>
    %c8_i32_27 = arith.constant 8 : i32
    %86 = vector.broadcast %c8_i32_27 : i32 to vector<8x1xi32>
    %87 = arith.cmpi slt, %85, %86 : vector<8x1xi32>
    %cst_28 = arith.constant 0.000000e+00 : f32
    %88 = vector.broadcast %cst_28 : f32 to vector<8x1xf32>
    %89 = arith.select %87, %81, %88 : vector<8x1xi1>, vector<8x1xf32>
    %90 = vector.shape_cast %89 : vector<8x1xf32> to vector<1x8x1xf32>
    %cst_29 = arith.constant dense<0.000000e+00> : vector<1xf32>
    %91 = vector.multi_reduction <add>, %90, %cst_29 [1, 2] : vector<1x8x1xf32> to vector<1xf32>
    %92 = vector.shape_cast %91 : vector<1xf32> to vector<1x1x1xf32>
    %93 = vector.extract %92[0, 0, 0] : f32 from vector<1x1x1xf32>
    %c0_30 = arith.constant 0 : index
    %c0_31 = arith.constant 0 : index
    %94 = memref.load %arg4[%c0_30, %c0_31] : memref<1x1xf32, #tpu.memory_space<smem>>
    memref.store %93, %arg4[%c0_30, %c0_31] : memref<1x1xf32, #tpu.memory_space<smem>>
    return
  }
  func.func @transform_0(%arg0: i32) -> (i32, i32) {
    %c0_i32 = arith.constant 0 : i32
    %c0_i32_0 = arith.constant 0 : i32
    return %arg0, %c0_i32 : i32, i32
  }
  func.func @transform_1(%arg0: i32) -> (i32, i32) {
    %c0_i32 = arith.constant 0 : i32
    %c0_i32_0 = arith.constant 0 : i32
    return %arg0, %c0_i32 : i32, i32
  }
  func.func @transform_2(%arg0: i32) -> (i32, i32) {
    %c0_i32 = arith.constant 0 : i32
    %c0_i32_0 = arith.constant 0 : i32
    %c0_i32_1 = arith.constant 0 : i32
    return %c0_i32, %c0_i32_0 : i32, i32
  }
  func.func @transform_3(%arg0: i32) -> (i32, i32) {
    %c0_i32 = arith.constant 0 : i32
    %c0_i32_0 = arith.constant 0 : i32
    return %arg0, %c0_i32 : i32, i32
  }
}

</mosaic_0001>

<llo_original>
// kernel: tpu_custom_call.1
$region0: #{tpu_custom_call.1}
  #allocation0 [shape = 'u32[]', space=smem, size = 0x4, offset = 0x4, fixed_abs, tag = 'smem constant byte address 0x4 - core index']
  #allocation1 [shape = 'u32[144,128]{1,0:T(1,128)}', space=vmem, size = 0x12000, scoped, tag = 'internal scratch']
  %s0 = inlined_call_operand.hbm [shape: f32[8,32], index: 0, kind: input, shape index: {}]
  %s1 = inlined_call_operand.hbm [shape: f32[8,32], index: 1, kind: input, shape index: {}]
  %s2 = inlined_call_operand.hbm [shape: f32[8,32], index: 2, kind: input, shape index: {}]
  %s3 = inlined_call_operand.hbm [shape: f32[1,1], index: 3, kind: output, shape index: {}]
  %s4 = sld [smem:[#allocation0]]
  $region34: #{tpu_custom_call.1} parent=0
    _
  %s6 = ssub.s32 1, %s4
  %s7 = scalar_select 0, %s6, %s4
  $region1: #{tpu_custom_call.1} parent=0
    #allocation2 [shape = 'u8[4096]{0}', space=vmem, size = 0x1000, scoped, tag = 'input window, operand 0, single buffered']
    #allocation3 [shape = 's32[1]{0}', space=sflag, size = 0x4, scoped, tag = 'scoped memory for tpu_custom_call.1']
    #allocation4 [shape = 's32[1]{0}', space=sflag, size = 0x4, scoped, tag = 'scoped memory for tpu_custom_call.1']
    #allocation5 [shape = 'u8[4096]{0}', space=vmem, size = 0x1000, scoped, tag = 'input window, operand 1, single buffered']
    #allocation6 [shape = 's32[1]{0}', space=sflag, size = 0x4, scoped, tag = 'scoped memory for tpu_custom_call.1']
    #allocation7 [shape = 'u8[4096]{0}', space=vmem, size = 0x1000, scoped, tag = 'input window, operand 2, single buffered']
    #allocation8 [shape = 'u8[512]{0}', space=smem, size = 0x200, scoped, tag = 'output window, operand 0, single buffered']
    %8 = vsyncpa [#allocation3], 0
    %9 = vsyncpa [#allocation6], 0
    %10 = vsyncpa [#allocation4], 0
    // Predicated region
    $region2: #{tpu_custom_call.1} parent=1 // pred_check
      _
    $region3: #{tpu_custom_call.1} parent=1 // pred_check_branch
      %12 = sbr.rel (0) target = $region5
    $region4: #{tpu_custom_call.1} parent=1 // pred_region
      %s14 = ssub.s32 128, 128
      %15 = vsyncadd [#allocation3], %s14
      %s17 = sshll.u32 [#allocation2], 4
      %s18 = int_to_ptr.vmem [resolvable:$true] %s17
      %20 = dma.hbm_to_vmem [thread:$0]  %s0, 128, %s18, [#allocation3]
    $region5: #{tpu_custom_call.1} parent=1 // pred_fallthru
      _
    // Predicated region
    $region6: #{tpu_custom_call.1} parent=1 // pred_check
      _
    $region7: #{tpu_custom_call.1} parent=1 // pred_check_branch
      %22 = sbr.rel (0) target = $region9
    $region8: #{tpu_custom_call.1} parent=1 // pred_region
      %s24 = ssub.s32 128, 128
      %25 = vsyncadd [#allocation6], %s24
      %s27 = sshll.u32 [#allocation5], 4
      %s28 = int_to_ptr.vmem [resolvable:$true] %s27
      %30 = dma.hbm_to_vmem [thread:$0]  %s1, 128, %s28, [#allocation6]
    $region9: #{tpu_custom_call.1} parent=1 // pred_fallthru
      _
    // Predicated region
    $region10: #{tpu_custom_call.1} parent=1 // pred_check
      _
    $region11: #{tpu_custom_call.1} parent=1 // pred_check_branch
      %32 = sbr.rel (0) target = $region13
    $region12: #{tpu_custom_call.1} parent=1 // pred_region
      %s34 = ssub.s32 128, 128
      %35 = vsyncadd [#allocation6], %s34
      %s37 = sshll.u32 [#allocation7], 4
      %s38 = int_to_ptr.vmem [resolvable:$true] %s37
      %40 = dma.hbm_to_vmem [thread:$0]  %s2, 128, %s38, [#allocation6]
    $region13: #{tpu_custom_call.1} parent=1 // pred_fallthru
      _
    // Predicated region
    $region14: #{tpu_custom_call.1} parent=1 // pred_check
      _
    $region15: #{tpu_custom_call.1} parent=1 // pred_check_branch
      %42 = sbr.rel (0) target = $region17
    $region16: #{tpu_custom_call.1} parent=1 // pred_region
      %43 = dma.done [#allocation3], 128
    $region17: #{tpu_custom_call.1} parent=1 // pred_fallthru
      _
    // Predicated region
    $region18: #{tpu_custom_call.1} parent=1 // pred_check
      _
    $region19: #{tpu_custom_call.1} parent=1 // pred_check_branch
      %45 = sbr.rel (0) target = $region21
    $region20: #{tpu_custom_call.1} parent=1 // pred_region
      %46 = dma.done [#allocation6], 128
    $region21: #{tpu_custom_call.1} parent=1 // pred_fallthru
      _
    // Predicated region
    $region22: #{tpu_custom_call.1} parent=1 // pred_check
      _
    $region23: #{tpu_custom_call.1} parent=1 // pred_check_branch
      %48 = sbr.rel (0) target = $region25
    $region24: #{tpu_custom_call.1} parent=1 // pred_region
      %49 = dma.done [#allocation6], 128
    $region25: #{tpu_custom_call.1} parent=1 // pred_fallthru
      _
    %v50 = vld [vmem:[#allocation2] sm:$0xff]
    %v51 = vmul.f32 %v50, %v50
    %vm52 = vcmask 261120
    %v53 = vsel %vm52, %v51, 0.0
    %54 = vadd.xlane.f32.xlu0 %v53
    %v55 = vpop.xlane.xlu0 %54
    %v56 = vmax.f32 %v55, 1e-24
    %v57 = vrsqrt.pop %v56
    %v58 = vmul.f32 %v50, %v57
    %v59 = vld [vmem:[#allocation5] sm:$0xff]
    %v60 = vmul.f32 %v59, %v59
    %v61 = vsel %vm52, %v60, 0.0
    %62 = vadd.xlane.f32.xlu0 %v61
    %v63 = vpop.xlane.xlu0 %62
    %v64 = vmax.f32 %v63, 1e-24
    %v65 = vrsqrt.pop %v64
    %v66 = vmul.f32 %v59, %v65
    %v67 = vld [vmem:[#allocation7] sm:$0xff]
    %v69 = vsel %vm52, %v58, 0
    %v72 = vsel %vm52, %v67, 0
    %74 = vmatprep.subr.mxu0 0.0
    %75 = vmatpush1.xpose.msra.mxu0 %v72
    %76 = vmatprep.subr.mxu0 0.0
    %77 = vmatpush1.xpose.msra.mxu0 0.0
    %78 = vmatprep.subr.mxu0 0.0
    %79 = vmatpush1.xpose.msra.mxu0 0.0
    %80 = vmatprep.subr.mxu0 0.0
    %81 = vmatpush1.xpose.msra.mxu0 0.0
    %82 = vmatprep.subr.mxu0 0.0
    %83 = vmatpush1.xpose.msra.mxu0 0.0
    %84 = vmatprep.subr.mxu0 0.0
    %85 = vmatpush1.xpose.msra.mxu0 0.0
    %86 = vmatprep.subr.mxu0 0.0
    %87 = vmatpush1.xpose.msra.mxu0 0.0
    %88 = vmatprep.subr.mxu0 0.0
    %89 = vmatpush1.xpose.msra.mxu0 0.0
    %90 = vmatprep.subr.mxu0 0.0
    %91 = vmatpush1.xpose.msra.mxu0 0.0
    %92 = vmatprep.subr.mxu0 0.0
    %93 = vmatpush1.xpose.msra.mxu0 0.0
    %94 = vmatprep.subr.mxu0 0.0
    %95 = vmatpush1.xpose.msra.mxu0 0.0
    %96 = vmatprep.subr.mxu0 0.0
    %97 = vmatpush1.xpose.msra.mxu0 0.0
    %98 = vmatprep.subr.mxu0 0.0
    %99 = vmatpush1.xpose.msra.mxu0 0.0
    %100 = vmatprep.subr.mxu0 0.0
    %101 = vmatpush1.xpose.msra.mxu0 0.0
    %102 = vmatprep.subr.mxu0 0.0
    %103 = vmatpush1.xpose.msra.mxu0 0.0
    %104 = vmatprep.subr.mxu0 0.0
    %105 = vmatpush1.xpose.msra.mxu0 0.0
    %106 = vmatprep.subr.mxu0 0.0
    %107 = vmatpush1.xpose.msra.mxu0 0.0
    %108 = vmatprep.subr.mxu0 0.0
    %109 = vmatpush1.xpose.msra.mxu0 0.0
    %110 = vmatprep.subr.mxu0 0.0
    %111 = vmatpush1.xpose.msra.mxu0 0.0
    %112 = vmatprep.subr.mxu0 0.0
    %113 = vmatpush1.xpose.msra.mxu0 0.0
    %114 = vmatprep.subr.mxu0 0.0
    %115 = vmatpush1.xpose.msra.mxu0 0.0
    %116 = vmatprep.subr.mxu0 0.0
    %117 = vmatpush1.xpose.msra.mxu0 0.0
    %118 = vmatprep.subr.mxu0 0.0
    %119 = vmatpush1.xpose.msra.mxu0 0.0
    %120 = vmatprep.subr.mxu0 0.0
    %121 = vmatpush1.xpose.msra.mxu0 0.0
    %122 = vmatprep.subr.mxu0 0.0
    %123 = vmatpush1.xpose.msra.mxu0 0.0
    %124 = vmatprep.subr.mxu0 0.0
    %125 = vmatpush1.xpose.msra.mxu0 0.0
    %126 = vmatprep.subr.mxu0 0.0
    %127 = vmatpush1.xpose.msra.mxu0 0.0
    %128 = vmatprep.subr.mxu0 0.0
    %129 = vmatpush1.xpose.msra.mxu0 0.0
    %130 = vmatprep.subr.mxu0 0.0
    %131 = vmatpush1.xpose.msra.mxu0 0.0
    %132 = vmatprep.subr.mxu0 0.0
    %133 = vmatpush1.xpose.msra.mxu0 0.0
    %134 = vmatprep.subr.mxu0 0.0
    %135 = vmatpush1.xpose.msra.mxu0 0.0
    %136 = vmatprep.subr.mxu0 0.0
    %137 = vmatpush1.xpose.msra.mxu0 0.0
    %138 = vmatprep.mubr.f32.mxu0 0.0
    %139 = vmatmul.mubr.f32.gmra.mrb[0].mxu0 %v69
    %v140 = vpop.f32.mrb[0].mxu0
    %v141 = vadd.f32 0.0, %v140
    %v142 = vpop.f32.mrb[0].mxu0
    %143 = vdwg.mxu0
    %v145 = vsel %vm52, %v66, 0
    %147 = vmatprep.subr.mxu0 0.0
    %148 = vmatpush1.xpose.msra.mxu0 %v72
    %149 = vmatprep.subr.mxu0 0.0
    %150 = vmatpush1.xpose.msra.mxu0 0.0
    %151 = vmatprep.subr.mxu0 0.0
    %152 = vmatpush1.xpose.msra.mxu0 0.0
    %153 = vmatprep.subr.mxu0 0.0
    %154 = vmatpush1.xpose.msra.mxu0 0.0
    %155 = vmatprep.subr.mxu0 0.0
    %156 = vmatpush1.xpose.msra.mxu0 0.0
    %157 = vmatprep.subr.mxu0 0.0
    %158 = vmatpush1.xpose.msra.mxu0 0.0
    %159 = vmatprep.subr.mxu0 0.0
    %160 = vmatpush1.xpose.msra.mxu0 0.0
    %161 = vmatprep.subr.mxu0 0.0
    %162 = vmatpush1.xpose.msra.mxu0 0.0
    %163 = vmatprep.subr.mxu0 0.0
    %164 = vmatpush1.xpose.msra.mxu0 0.0
    %165 = vmatprep.subr.mxu0 0.0
    %166 = vmatpush1.xpose.msra.mxu0 0.0
    %167 = vmatprep.subr.mxu0 0.0
    %168 = vmatpush1.xpose.msra.mxu0 0.0
    %169 = vmatprep.subr.mxu0 0.0
    %170 = vmatpush1.xpose.msra.mxu0 0.0
    %171 = vmatprep.subr.mxu0 0.0
    %172 = vmatpush1.xpose.msra.mxu0 0.0
    %173 = vmatprep.subr.mxu0 0.0
    %174 = vmatpush1.xpose.msra.mxu0 0.0
    %175 = vmatprep.subr.mxu0 0.0
    %176 = vmatpush1.xpose.msra.mxu0 0.0
    %177 = vmatprep.subr.mxu0 0.0
    %178 = vmatpush1.xpose.msra.mxu0 0.0
    %179 = vmatprep.subr.mxu0 0.0
    %180 = vmatpush1.xpose.msra.mxu0 0.0
    %181 = vmatprep.subr.mxu0 0.0
    %182 = vmatpush1.xpose.msra.mxu0 0.0
    %183 = vmatprep.subr.mxu0 0.0
    %184 = vmatpush1.xpose.msra.mxu0 0.0
    %185 = vmatprep.subr.mxu0 0.0
    %186 = vmatpush1.xpose.msra.mxu0 0.0
    %187 = vmatprep.subr.mxu0 0.0
    %188 = vmatpush1.xpose.msra.mxu0 0.0
    %189 = vmatprep.subr.mxu0 0.0
    %190 = vmatpush1.xpose.msra.mxu0 0.0
    %191 = vmatprep.subr.mxu0 0.0
    %192 = vmatpush1.xpose.msra.mxu0 0.0
    %193 = vmatprep.subr.mxu0 0.0
    %194 = vmatpush1.xpose.msra.mxu0 0.0
    %195 = vmatprep.subr.mxu0 0.0
    %196 = vmatpush1.xpose.msra.mxu0 0.0
    %197 = vmatprep.subr.mxu0 0.0
    %198 = vmatpush1.xpose.msra.mxu0 0.0
    %199 = vmatprep.subr.mxu0 0.0
    %200 = vmatpush1.xpose.msra.mxu0 0.0
    %201 = vmatprep.subr.mxu0 0.0
    %202 = vmatpush1.xpose.msra.mxu0 0.0
    %203 = vmatprep.subr.mxu0 0.0
    %204 = vmatpush1.xpose.msra.mxu0 0.0
    %205 = vmatprep.subr.mxu0 0.0
    %206 = vmatpush1.xpose.msra.mxu0 0.0
    %207 = vmatprep.subr.mxu0 0.0
    %208 = vmatpush1.xpose.msra.mxu0 0.0
    %209 = vmatprep.subr.mxu0 0.0
    %210 = vmatpush1.xpose.msra.mxu0 0.0
    %211 = vmatprep.mubr.f32.mxu0 0.0
    %212 = vmatmul.mubr.f32.gmra.mrb[0].mxu0 %v145
    %v213 = vpop.f32.mrb[0].mxu0
    %v214 = vadd.f32 0.0, %v213
    %v215 = vpop.f32.mrb[0].mxu0
    %216 = vdwg.mxu0
    %vm217 = vcmask 64512
    %v218 = vsel %vm217, %v141, -inf
    %219 = vmax.xlane.f32.xlu0 %v218
    %v220 = vpop.xlane.xlu0 %219
    %v221 = vsub.f32 %v141, %v220
    %v222 = vsel %vm217, %v214, -inf
    %223 = vmax.xlane.f32.xlu0 %v222
    %v224 = vpop.xlane.xlu0 %223
    %v225 = vsub.f32 %v214, %v224
    %v226 = vmul.f32 %v221, 1.442695
    %v227 = vpow.pop %v226
    %v228 = vmul.f32 %v225, 1.442695
    %v229 = vpow.pop %v228
    %v230 = vsel %vm217, %v227, 0.0
    %231 = vadd.xlane.f32.xlu0 %v230
    %v232 = vpop.xlane.xlu0 %231
    %v233 = vrcp.pop %v232
    %v234 = vmul.f32 1.0, %v233
    %v235 = vmul.f32 %v227, %v234
    %v236 = vsel %vm217, %v229, 0.0
    %237 = vadd.xlane.f32.xlu0 %v236
    %v238 = vpop.xlane.xlu0 %237
    %v239 = vrcp.pop %v238
    %v240 = vmul.f32 1.0, %v239
    %v241 = vmul.f32 %v229, %v240
    %v242 = vadd.f32 %v235, %v241
    %v243 = vmul.f32 %v242, 0.5
    %v244 = vsel %vm217, %v243, -inf
    %245 = vmax.xlane.f32.xlu0 %v244
    %v246 = vpop.xlane.xlu0 %245
    %v247 = vsub.f32 %v243, %v246
    %v248 = vmul.f32 %v247, 1.442695
    %v249 = vpow.pop %v248
    %v250 = vsel %vm217, %v249, 0.0
    %251 = vadd.xlane.f32.xlu0 %v250
    %v252 = vpop.xlane.xlu0 %251
    %v253 = vrcp.pop %v252
    %v254 = vmul.f32 1.0, %v253
    %v255 = vmul.f32 %v249, %v254
    %v256 = vmul.f32 %v221, 10.0
    %v257 = vmul.f32 %v225, 100.0
    %v258 = vmul.f32 %v256, 1.442695
    %v259 = vpow.pop %v258
    %v260 = vsel %vm217, %v259, 0.0
    %261 = vadd.xlane.f32.xlu0 %v260
    %v262 = vpop.xlane.xlu0 %261
    %v263 = vmul.f32 %v257, 1.442695
    %v264 = vpow.pop %v263
    %v265 = vsel %vm217, %v264, 0.0
    %266 = vadd.xlane.f32.xlu0 %v265
    %v267 = vpop.xlane.xlu0 %266
    %v268 = vmul.f32 %v247, 2.0
    %v269 = vsub.f32 %v268, %v256
    %v270 = vsub.f32 %v269, %v257
    %v271 = vmul.f32 %v255, %v270
    %v272 = vsel %vm217, %v271, 0.0
    %273 = vadd.xlane.f32.xlu0 %v272
    %v274 = vpop.xlane.xlu0 %273
    %v275 = vlog2.pop %v252
    %v276 = vmul.f32 %v275, 0.6931472
    %v277 = vmul.f32 %v276, 2.0
    %v278 = vsub.f32 %v274, %v277
    %v279 = vlog2.pop %v262
    %v280 = vmul.f32 %v279, 0.6931472
    %v281 = vadd.f32 %v278, %v280
    %v282 = vlog2.pop %v267
    %v283 = vmul.f32 %v282, 0.6931472
    %v284 = vadd.f32 %v281, %v283
    %s285 = smul.u32 0, 8
    %v286 = vlaneseq
    %v287 = vshrl.u32 %v286, 7
    %v288 = vstv %s285
    %v289 = vadd.s32 %v288, %v287
    %vm290 = vcmp.lt.s32.totalorder %v289, 8
    %v291 = vsel %vm290, %v284, 0.0
    %vm292 = vcmask 7168
    %v293 = vsel %vm292, %v291, 0.0
    %294 = vadd.xlane.f32.xlu0 %v293
    %v295 = vpop.xlane.xlu0 %294
    %v296 = vrot.slane %v295, 4
    %v297 = vadd.f32 %v295, %v296
    %v298 = vrot.slane %v297, 2
    %v299 = vadd.f32 %v297, %v298
    %v300 = vrot.slane %v299, 1
    %v301 = vadd.f32 %v299, %v300
    %s302 = vtos %v301
    %s303 = scalar_lea.smem [#allocation8], 0
    %304 = sst [smem:[%s303]] %s302
    // Predicated region
    $region26: #{tpu_custom_call.1} parent=1 // pred_check
      _
    $region27: #{tpu_custom_call.1} parent=1 // pred_check_branch
      %306 = sbr.rel (0) target = $region29
    $region28: #{tpu_custom_call.1} parent=1 // pred_region
      %s308 = ssub.s32 16, 16
      %309 = vsyncadd [#allocation4], %s308
      %312 = dma.smem_to_hbm [#allocation8], 16, %s3, [#allocation4]
    $region29: #{tpu_custom_call.1} parent=1 // pred_fallthru
      _
    // Predicated region
    $region30: #{tpu_custom_call.1} parent=1 // pred_check
      _
    $region31: #{tpu_custom_call.1} parent=1 // pred_check_branch
      %314 = sbr.rel (0) target = $region33
    $region32: #{tpu_custom_call.1} parent=1 // pred_region
      %315 = dma.done [#allocation4], 16
    $region33: #{tpu_custom_call.1} parent=1 // pred_fallthru
      _
    %316 = sfence
    %317 = vsyncpa [#allocation3], 1
    %318 = vsyncpa [#allocation6], 1
    %319 = vsyncpa [#allocation4], 1

</llo_original>
